<compile_context>
chip_gen: v5e
topology: v5e:2x2
jax: 0.10.0
libtpu: 0.0.40
codegen_flags: <defaults>
</compile_context>

<pallas_src>
import jax
import jax.numpy as jnp
from jax.experimental import pallas as pl
from jax.experimental.pallas import tpu as pltpu


_VMEM_BUDGET = 24 * 1024 * 1024   # per-step working-set target (fits all generations)
_VMEM_LIMIT = 48 * 1024 * 1024    # raised scoped-VMEM limit (< v7x 64 MiB physical)


def _downsample_kernel(x_ref, xtop_ref, xbot_ref, w_ref, o_ref):
    # x_ref   : (1, tile_h, W2, 2*Cin)  rows [t*tile_h, (t+1)*tile_h) of W-parity-folded input
    # xtop_ref: (1, 1,      W2, 2*Cin)  row t*tile_h - 1   (clamped; zeroed here when t == 0)
    # xbot_ref: (1, 1,      W2, 2*Cin)  row (t+1)*tile_h   (clamped; zeroed when t == last)
    # w_ref   : (16*Cin, 4*Cout)        fused conv + unshuffle weight
    # o_ref   : (1, tile_h//2, W2, 4*Cout)
    t = pl.program_id(1)
    n_t = pl.num_programs(1)

    tile_h, W2, C2in = x_ref.shape[1], x_ref.shape[2], x_ref.shape[3]
    Cin = C2in // 2
    th2 = tile_h // 2
    C4out = o_ref.shape[3]
    dt = x_ref.dtype

    # Assemble the (tile_h + 2) rows needed by this tile; halo rows masked at the image edges.
    x_main = x_ref[0]                                        # (tile_h, W2, 2Cin)
    top = xtop_ref[0] * (t > 0).astype(dt)                   # (1, W2, 2Cin)
    bot = xbot_ref[0] * (t < n_t - 1).astype(dt)             # (1, W2, 2Cin)
    xh = jnp.concatenate([top, x_main, bot], axis=0)         # (tile_h+2, W2, 2Cin)

    # In-kernel zero padding of the width axis (one folded column on each side covers the
    # original columns -1 and W).
    zcol = jnp.zeros((tile_h + 2, 1, C2in), dt)
    xw = jnp.concatenate([zcol, xh, zcol], axis=1)           # (tile_h+2, W2+2, 2Cin)

    # Split even / odd conv rows (outer-dim split -> free, no relayout).
    x_sp = xw.reshape((tile_h + 2) // 2, 2, W2 + 2, C2in)
    x_par = (x_sp[:, 0], x_sp[:, 1])                         # each (th2+1, W2+2, 2Cin)

    # im2col for the equivalent 4x4 / stride-2 conv: 16 taps, each (th2, W2, Cin),
    # concatenated along lanes.  Every slice is contiguous (the W parity lives in lanes).
    taps = []
    for ky in range(4):
        kp, kh = ky % 2, ky // 2
        rows = x_par[kp][kh:kh + th2]                        # (th2, W2+2, 2Cin)
        for kx in range(4):
            woff = (kx + 1) // 2                             # column offset in folded coords
            par = (kx + 1) % 2                               # W parity -> lane block
            taps.append(rows[:, woff:woff + W2, par * Cin:(par + 1) * Cin])
    col = jnp.concatenate(taps, axis=-1)                     # (th2, W2, 16*Cin)
    col = col.reshape(th2 * W2, 16 * Cin)

    # Single MXU matmul: K = 16*Cin, N = 4*Cout, f32 accumulation.
    y = jnp.dot(col, w_ref[...], preferred_element_type=jnp.float32)

    # Dense, lane-wide (4*Cout) store; channel order already matches PixelUnshuffle(2).
    o_ref[0] = y.reshape(th2, W2, C4out).astype(o_ref.dtype)


def _fused_weight(weight_oihw, dtype):
    """(Cout, Cin, 3, 3) OIHW conv weight -> (16*Cin, 4*Cout) weight of the equivalent
    4x4 / stride-2 conv.  Row order matches the kernel's tap order (ky, kx, ci); column
    order is PixelUnshuffle(2) order q = c*4 + ry*2 + rx."""
    Cout, Cin = weight_oihw.shape[0], weight_oihw.shape[1]
    w_hwio = jnp.transpose(weight_oihw, (2, 3, 1, 0))        # (3, 3, Cin, Cout)
    w4 = jnp.zeros((4, 4, Cin, Cout, 2, 2), w_hwio.dtype)    # [ky, kx, ci, c, ry, rx]
    for ry in range(2):
        for rx in range(2):
            w4 = w4.at[ry:ry + 3, rx:rx + 3, :, :, ry, rx].set(w_hwio)
    return w4.reshape(16 * Cin, 4 * Cout).astype(dtype)


def _pick_tile_h(H, W2, Cin, Cout, itemsize, budget_bytes):
    """Largest even divisor of H whose estimated per-step VMEM footprint fits the budget."""
    best = 2
    for th in range(2, H + 1, 2):
        if H % th:
            continue
        th2 = th // 2
        est = (
            2 * th * W2 * 2 * Cin * itemsize                 # double-buffered main input block
            + 2 * 2 * W2 * 2 * Cin * itemsize                # halo-row blocks
            + 2 * 16 * Cin * 4 * Cout * itemsize             # weight
            + 2 * th2 * W2 * 4 * Cout * itemsize             # double-buffered output block
            + th2 * W2 * 16 * Cin * itemsize                 # im2col slab temp
            + 2 * (th + 2) * (W2 + 2) * 2 * Cin * itemsize   # padded-tile temps
            + th2 * W2 * 4 * Cout * 4                        # f32 matmul result
        )
        if est <= budget_bytes:
            best = th
    return best


def downsample_forward(x_nchw, weight_oihw, *, tile_h=None, compute_dtype=None):
    """Downsample.forward: Conv2d(n_feat -> n_feat//2, 3x3, stride 1, pad 1, no bias)
    followed by PixelUnshuffle(2).

    x_nchw:      (B, n_feat, H, W)
    weight_oihw: (n_feat//2, n_feat, 3, 3)
    returns:     (B, 2*n_feat, H//2, W//2)
    """
    B, Cin, H, W = x_nchw.shape
    Cout = weight_oihw.shape[0]
    assert H % 2 == 0 and W % 2 == 0, "PixelUnshuffle(2) needs even H and W"
    H2, W2 = H // 2, W // 2

    cdt = jnp.dtype(compute_dtype) if compute_dtype is not None else x_nchw.dtype
    odt = x_nchw.dtype

    if tile_h is None:
        tile_h = _pick_tile_h(H, W2, Cin, Cout, jnp.dtype(cdt).itemsize, _VMEM_BUDGET)
    assert tile_h % 2 == 0 and H % tile_h == 0, "tile_h must be even and divide H"
    n_t = H // tile_h
    th2 = tile_h // 2

    # NCHW -> NHWC (one XLA copy), then fold the W parity into the lane dim (free reshape):
    # xr[b, i, j2, p*Cin + ci] == x[b, ci, i, 2*j2 + p].
    x_nhwc = jnp.transpose(x_nchw, (0, 2, 3, 1)).astype(cdt)
    xr = x_nhwc.reshape(B, H, W2, 2 * Cin)

    w4 = _fused_weight(weight_oihw, cdt)                     # (16*Cin, 4*Cout)

    main_spec = pl.BlockSpec((1, tile_h, W2, 2 * Cin), lambda b, t: (b, t, 0, 0))
    top_spec = pl.BlockSpec((1, 1, W2, 2 * Cin),
                            lambda b, t: (b, jnp.maximum(t * tile_h - 1, 0), 0, 0))
    bot_spec = pl.BlockSpec((1, 1, W2, 2 * Cin),
                            lambda b, t: (b, jnp.minimum((t + 1) * tile_h, H - 1), 0, 0))
    w_spec = pl.BlockSpec((16 * Cin, 4 * Cout), lambda b, t: (0, 0))
    out_spec = pl.BlockSpec((1, th2, W2, 4 * Cout), lambda b, t: (b, t, 0, 0))

    y = pl.pallas_call(
        _downsample_kernel,
        out_shape=jax.ShapeDtypeStruct((B, H2, W2, 4 * Cout), odt),
        grid_spec=pltpu.PrefetchScalarGridSpec(
            num_scalar_prefetch=0,
            grid=(B, n_t),
            in_specs=[main_spec, top_spec, bot_spec, w_spec],
            out_specs=out_spec,
        ),
        compiler_params=pltpu.CompilerParams(
            dimension_semantics=("parallel", "parallel"),
            vmem_limit_bytes=_VMEM_LIMIT,
        ),
    )(xr, xr, xr, w4)

    # Only post-kernel data movement: one NHWC -> NCHW transpose (channel order already final).
    return jnp.transpose(y, (0, 3, 1, 2))


def pixel_unshuffle_nchw(y_nchw, r):
    """Reference helper, same semantics as downshuffle(var, r) in the PyTorch module."""
    b, c, h, w = y_nchw.shape
    y = y_nchw.reshape(b, c, h // r, r, w // r, r)
    y = jnp.transpose(y, (0, 1, 3, 5, 2, 4))
    return y.reshape(b, c * r * r, h // r, w // r)


if __name__ == "__main__":
    key = jax.random.PRNGKey(0)
    kx, kw = jax.random.split(key)

    B, n_feat, H, W = 2, 4, 16, 16
    x = jax.random.normal(kx, (B, n_feat, H, W), dtype=jnp.float32)
    # Deterministic synthetic Conv2d weight (out=n_feat//2, in=n_feat, 3, 3), no bias.
    weight = jax.random.normal(kw, (n_feat // 2, n_feat, 3, 3), dtype=jnp.float32) * 0.1

    # Plain-JAX reference: conv (pad=1) + pixel-unshuffle(2), all in NCHW.
    y_ref = jax.lax.conv_general_dilated(
        x, weight, window_strides=(1, 1), padding=((1, 1), (1, 1)),
        dimension_numbers=("NCHW", "OIHW", "NCHW"))
    ref = pixel_unshuffle_nchw(y_ref, 2)

    fwd = jax.jit(downsample_forward, static_argnames=("tile_h", "compute_dtype"))

    # Default (auto tile size, f32 compute).
    out = jax.block_until_ready(fwd(x, weight))
    assert out.shape == (B, 2 * n_feat, H // 2, W // 2), out.shape
    assert jnp.allclose(out, ref, atol=1e-4, rtol=1e-4), float(jnp.max(jnp.abs(out - ref)))

    # Multi-tile configurations (exercise the halo rows / edge masking).
    out_t8 = jax.block_until_ready(fwd(x, weight, tile_h=8))
    assert jnp.allclose(out_t8, ref, atol=1e-4, rtol=1e-4), float(jnp.max(jnp.abs(out_t8 - ref)))
    out_t2 = jax.block_until_ready(fwd(x, weight, tile_h=2))
    assert jnp.allclose(out_t2, ref, atol=1e-4, rtol=1e-4), float(jnp.max(jnp.abs(out_t2 - ref)))

    # bf16 compute path (halves HBM traffic on v6e/v7x); f32 accumulation, looser tolerance.
    out_bf16 = jax.block_until_ready(fwd(x, weight, tile_h=8, compute_dtype=jnp.bfloat16))
    assert jnp.allclose(out_bf16, ref, atol=5e-2, rtol=5e-2), \
        float(jnp.max(jnp.abs(out_bf16 - ref)))

    print("KERNEL_OK")
</pallas_src>

<mosaic_0001>
module attributes {stable_mosaic.version = 11 : i64} {
  func.func @_downsample_kernel(%arg0: i32, %arg1: i32, %arg2: memref<1x16x8x8xf32, #tpu.memory_space<vmem>>, %arg3: memref<1x1x8x8xf32, #tpu.memory_space<vmem>>, %arg4: memref<1x1x8x8xf32, #tpu.memory_space<vmem>>, %arg5: memref<64x8xf32, #tpu.memory_space<vmem>>, %arg6: memref<1x8x8x8xf32, #tpu.memory_space<vmem>>) attributes {dimension_semantics = [#tpu.dimension_semantics<parallel>, #tpu.dimension_semantics<parallel>], iteration_bounds = array<i64: 2, 1>, scalar_prefetch = 0 : i64, scratch_operands = 0 : i64, tpu.core_type = #tpu.core_type<tc>, window_params = [{transform_indices = @transform_0, window_bounds = array<i64: 1, 16, 8, 8>}, {transform_indices = @transform_1, window_bounds = array<i64: 1, 1, 8, 8>}, {transform_indices = @transform_2, window_bounds = array<i64: 1, 1, 8, 8>}, {pipeline_mode = #tpu.pipeline_mode<synchronous>, transform_indices = @transform_3, window_bounds = array<i64: 64, 8>}, {transform_indices = @transform_4, window_bounds = array<i64: 1, 8, 8, 8>}]} {
    %c0 = arith.constant 0 : index
    %c0_0 = arith.constant 0 : index
    %c0_1 = arith.constant 0 : index
    %c0_2 = arith.constant 0 : index
    %0 = vector.load %arg2[%c0, %c0_0, %c0_1, %c0_2] : memref<1x16x8x8xf32, #tpu.memory_space<vmem>>, vector<1x16x8x8xf32>
    %1 = vector.shape_cast %0 : vector<1x16x8x8xf32> to vector<16x8x8xf32>
    %c0_3 = arith.constant 0 : index
    %c0_4 = arith.constant 0 : index
    %c0_5 = arith.constant 0 : index
    %c0_6 = arith.constant 0 : index
    %2 = vector.load %arg3[%c0_3, %c0_4, %c0_5, %c0_6] : memref<1x1x8x8xf32, #tpu.memory_space<vmem>>, vector<1x1x8x8xf32>
    %3 = vector.shape_cast %2 : vector<1x1x8x8xf32> to vector<1x8x8xf32>
    %c0_i32 = arith.constant 0 : i32
    %4 = arith.cmpi sgt, %arg1, %c0_i32 : i32
    %5 = arith.extui %4 : i1 to i32
    %6 = arith.sitofp %5 : i32 to f32
    %7 = vector.broadcast %6 : f32 to vector<1x8x8xf32>
    %8 = arith.mulf %3, %7 : vector<1x8x8xf32>
    %c0_7 = arith.constant 0 : index
    %c0_8 = arith.constant 0 : index
    %c0_9 = arith.constant 0 : index
    %c0_10 = arith.constant 0 : index
    %9 = vector.load %arg4[%c0_7, %c0_8, %c0_9, %c0_10] : memref<1x1x8x8xf32, #tpu.memory_space<vmem>>, vector<1x1x8x8xf32>
    %10 = vector.shape_cast %9 : vector<1x1x8x8xf32> to vector<1x8x8xf32>
    %c0_i32_11 = arith.constant 0 : i32
    %11 = arith.cmpi slt, %arg1, %c0_i32_11 : i32
    %12 = arith.extui %11 : i1 to i32
    %13 = arith.sitofp %12 : i32 to f32
    %14 = vector.broadcast %13 : f32 to vector<1x8x8xf32>
    %15 = arith.mulf %10, %14 : vector<1x8x8xf32>
    %16 = tpu.concatenate %8, %1, %15 in 0 : vector<1x8x8xf32>, vector<16x8x8xf32>, vector<1x8x8xf32> -> vector<18x8x8xf32>
    %cst = arith.constant 0.000000e+00 : f32
    %17 = vector.broadcast %cst : f32 to vector<18x1x8xf32>
    %18 = tpu.concatenate %17, %16, %17 in 1 : vector<18x1x8xf32>, vector<18x8x8xf32>, vector<18x1x8xf32> -> vector<18x10x8xf32>
    %19 = vector.shape_cast %18 : vector<18x10x8xf32> to vector<9x2x10x8xf32>
    %20 = vector.extract_strided_slice %19 {offsets = [0, 0, 0, 0], sizes = [9, 1, 10, 8], strides = [1, 1, 1, 1]} : vector<9x2x10x8xf32> to vector<9x1x10x8xf32>
    %21 = vector.shape_cast %20 : vector<9x1x10x8xf32> to vector<9x10x8xf32>
    %22 = vector.extract_strided_slice %19 {offsets = [0, 1, 0, 0], sizes = [9, 1, 10, 8], strides = [1, 1, 1, 1]} : vector<9x2x10x8xf32> to vector<9x1x10x8xf32>
    %23 = vector.shape_cast %22 : vector<9x1x10x8xf32> to vector<9x10x8xf32>
    %24 = vector.extract_strided_slice %21 {offsets = [0, 0, 0], sizes = [8, 10, 8], strides = [1, 1, 1]} : vector<9x10x8xf32> to vector<8x10x8xf32>
    %25 = vector.extract_strided_slice %24 {offsets = [0, 0, 4], sizes = [8, 8, 4], strides = [1, 1, 1]} : vector<8x10x8xf32> to vector<8x8x4xf32>
    %26 = vector.extract_strided_slice %24 {offsets = [0, 1, 0], sizes = [8, 8, 4], strides = [1, 1, 1]} : vector<8x10x8xf32> to vector<8x8x4xf32>
    %27 = vector.extract_strided_slice %24 {offsets = [0, 1, 4], sizes = [8, 8, 4], strides = [1, 1, 1]} : vector<8x10x8xf32> to vector<8x8x4xf32>
    %28 = vector.extract_strided_slice %24 {offsets = [0, 2, 0], sizes = [8, 8, 4], strides = [1, 1, 1]} : vector<8x10x8xf32> to vector<8x8x4xf32>
    %29 = vector.extract_strided_slice %23 {offsets = [0, 0, 0], sizes = [8, 10, 8], strides = [1, 1, 1]} : vector<9x10x8xf32> to vector<8x10x8xf32>
    %30 = vector.extract_strided_slice %29 {offsets = [0, 0, 4], sizes = [8, 8, 4], strides = [1, 1, 1]} : vector<8x10x8xf32> to vector<8x8x4xf32>
    %31 = vector.extract_strided_slice %29 {offsets = [0, 1, 0], sizes = [8, 8, 4], strides = [1, 1, 1]} : vector<8x10x8xf32> to vector<8x8x4xf32>
    %32 = vector.extract_strided_slice %29 {offsets = [0, 1, 4], sizes = [8, 8, 4], strides = [1, 1, 1]} : vector<8x10x8xf32> to vector<8x8x4xf32>
    %33 = vector.extract_strided_slice %29 {offsets = [0, 2, 0], sizes = [8, 8, 4], strides = [1, 1, 1]} : vector<8x10x8xf32> to vector<8x8x4xf32>
    %34 = vector.extract_strided_slice %21 {offsets = [1, 0, 0], sizes = [8, 10, 8], strides = [1, 1, 1]} : vector<9x10x8xf32> to vector<8x10x8xf32>
    %35 = vector.extract_strided_slice %34 {offsets = [0, 0, 4], sizes = [8, 8, 4], strides = [1, 1, 1]} : vector<8x10x8xf32> to vector<8x8x4xf32>
    %36 = vector.extract_strided_slice %34 {offsets = [0, 1, 0], sizes = [8, 8, 4], strides = [1, 1, 1]} : vector<8x10x8xf32> to vector<8x8x4xf32>
    %37 = vector.extract_strided_slice %34 {offsets = [0, 1, 4], sizes = [8, 8, 4], strides = [1, 1, 1]} : vector<8x10x8xf32> to vector<8x8x4xf32>
    %38 = vector.extract_strided_slice %34 {offsets = [0, 2, 0], sizes = [8, 8, 4], strides = [1, 1, 1]} : vector<8x10x8xf32> to vector<8x8x4xf32>
    %39 = vector.extract_strided_slice %23 {offsets = [1, 0, 0], sizes = [8, 10, 8], strides = [1, 1, 1]} : vector<9x10x8xf32> to vector<8x10x8xf32>
    %40 = vector.extract_strided_slice %39 {offsets = [0, 0, 4], sizes = [8, 8, 4], strides = [1, 1, 1]} : vector<8x10x8xf32> to vector<8x8x4xf32>
    %41 = vector.extract_strided_slice %39 {offsets = [0, 1, 0], sizes = [8, 8, 4], strides = [1, 1, 1]} : vector<8x10x8xf32> to vector<8x8x4xf32>
    %42 = vector.extract_strided_slice %39 {offsets = [0, 1, 4], sizes = [8, 8, 4], strides = [1, 1, 1]} : vector<8x10x8xf32> to vector<8x8x4xf32>
    %43 = vector.extract_strided_slice %39 {offsets = [0, 2, 0], sizes = [8, 8, 4], strides = [1, 1, 1]} : vector<8x10x8xf32> to vector<8x8x4xf32>
    %44 = tpu.concatenate %25, %26, %27, %28, %30, %31, %32, %33, %35, %36, %37, %38, %40, %41, %42, %43 in 2 : vector<8x8x4xf32>, vector<8x8x4xf32>, vector<8x8x4xf32>, vector<8x8x4xf32>, vector<8x8x4xf32>, vector<8x8x4xf32>, vector<8x8x4xf32>, vector<8x8x4xf32>, vector<8x8x4xf32>, vector<8x8x4xf32>, vector<8x8x4xf32>, vector<8x8x4xf32>, vector<8x8x4xf32>, vector<8x8x4xf32>, vector<8x8x4xf32>, vector<8x8x4xf32> -> vector<8x8x64xf32>
    %45 = vector.shape_cast %44 : vector<8x8x64xf32> to vector<64x64xf32>
    %c0_12 = arith.constant 0 : index
    %c0_13 = arith.constant 0 : index
    %46 = vector.load %arg5[%c0_12, %c0_13] : memref<64x8xf32, #tpu.memory_space<vmem>>, vector<64x8xf32>
    %cst_14 = arith.constant dense<0.000000e+00> : vector<64x8xf32>
    %47 = tpu.matmul %45, %46, %cst_14 {dimension_numbers = #tpu.dot_dimension_numbers<[1], [0], [0], [1], [0, 0, 1, 1], [], []>} : vector<64x64xf32>, vector<64x8xf32>, vector<64x8xf32> -> vector<64x8xf32>
    %48 = vector.shape_cast %47 : vector<64x8xf32> to vector<8x8x8xf32>
    %c0_15 = arith.constant 0 : index
    %c0_16 = arith.constant 0 : index
    %c0_17 = arith.constant 0 : index
    %c0_18 = arith.constant 0 : index
    %49 = vector.load %arg6[%c0_15, %c0_16, %c0_17, %c0_18] : memref<1x8x8x8xf32, #tpu.memory_space<vmem>>, vector<1x8x8x8xf32>
    %50 = vector.shape_cast %49 : vector<1x8x8x8xf32> to vector<8x8x8xf32>
    %51 = vector.shape_cast %48 : vector<8x8x8xf32> to vector<1x8x8x8xf32>
    tpu.vector_store %arg6[%c0_15, %c0_16, %c0_17, %c0_18], %51 {strides = array<i32>} : memref<1x8x8x8xf32, #tpu.memory_space<vmem>>, vector<1x8x8x8xf32>,
    return
  }
  func.func @transform_0(%arg0: i32, %arg1: i32) -> (i32, i32, i32, i32) {
    %c0_i32 = arith.constant 0 : i32
    %c0_i32_0 = arith.constant 0 : i32
    %c0_i32_1 = arith.constant 0 : i32
    return %arg0, %arg1, %c0_i32, %c0_i32_0 : i32, i32, i32, i32
  }
  func.func @transform_1(%arg0: i32, %arg1: i32) -> (i32, i32, i32, i32) {
    %c16_i32 = arith.constant 16 : i32
    %0 = arith.muli %arg1, %c16_i32 : i32
    %c1_i32 = arith.constant 1 : i32
    %1 = arith.subi %0, %c1_i32 : i32
    %c0_i32 = arith.constant 0 : i32
    %2 = arith.maxsi %1, %c0_i32 : i32
    %c0_i32_0 = arith.constant 0 : i32
    %c0_i32_1 = arith.constant 0 : i32
    %c0_i32_2 = arith.constant 0 : i32
    return %arg0, %2, %c0_i32_0, %c0_i32_1 : i32, i32, i32, i32
  }
  func.func @transform_2(%arg0: i32, %arg1: i32) -> (i32, i32, i32, i32) {
    %c1_i32 = arith.constant 1 : i32
    %0 = arith.addi %arg1, %c1_i32 : i32
    %c16_i32 = arith.constant 16 : i32
    %1 = arith.muli %0, %c16_i32 : i32
    %c15_i32 = arith.constant 15 : i32
    %2 = arith.minsi %1, %c15_i32 : i32
    %c0_i32 = arith.constant 0 : i32
    %c0_i32_0 = arith.constant 0 : i32
    %c0_i32_1 = arith.constant 0 : i32
    return %arg0, %2, %c0_i32, %c0_i32_0 : i32, i32, i32, i32
  }
  func.func @transform_3(%arg0: i32, %arg1: i32) -> (i32, i32) {
    %c0_i32 = arith.constant 0 : i32
    %c0_i32_0 = arith.constant 0 : i32
    %c0_i32_1 = arith.constant 0 : i32
    return %c0_i32, %c0_i32_0 : i32, i32
  }
  func.func @transform_4(%arg0: i32, %arg1: i32) -> (i32, i32, i32, i32) {
    %c0_i32 = arith.constant 0 : i32
    %c0_i32_0 = arith.constant 0 : i32
    %c0_i32_1 = arith.constant 0 : i32
    return %arg0, %arg1, %c0_i32, %c0_i32_0 : i32, i32, i32, i32
  }
}

</mosaic_0001>

<llo_original>
// kernel: downsample_forward.1
$region0: #{downsample_forward.1}
  #allocation0 [shape = 'u32[]', space=smem, size = 0x4, offset = 0x4, fixed_abs, tag = 'smem constant byte address 0x4 - core index']
  #allocation1 [shape = 'u32[72,128]{1,0:T(1,128)}', space=vmem, size = 0x9000, scoped, tag = 'internal scratch']
  %s0 = inlined_call_operand.vmem [shape: f32[2,16,8,8], index: 0, kind: input, shape index: {}, may-alias: {0,1,2}]
  %s1 = inlined_call_operand.vmem [shape: f32[2,16,8,8], index: 1, kind: input, shape index: {}, may-alias: {0,1,2}]
  %s2 = inlined_call_operand.vmem [shape: f32[2,16,8,8], index: 2, kind: input, shape index: {}, may-alias: {0,1,2}]
  %s3 = inlined_call_operand.vmem [shape: f32[64,8], index: 3, kind: input, shape index: {}]
  %s4 = inlined_call_operand.vmem [shape: f32[2,8,8,8], index: 4, kind: output, shape index: {}]
  %s5 = sld [smem:[#allocation0]]
  $region49: #{downsample_forward.1} parent=0
    _
  %s7 = ssub.s32 1, %s5
  %s8 = scalar_select 0, %s7, %s5
  loop: start=0, step=1, limit=4
  $region2: #{downsample_forward.1} parent=0 // loop_pre_header
    _
  $region3: #{downsample_forward.1} parent=0 // loop_header
    %s10 = sphi 0, %s14
    %p11 = scmp.ge.s32.totalorder %s10, 4
    %s17 = sphi 0, %s29
    %s18 = sphi 0, %s25
    %s19 = sphi 0, %s17
    %s20 = sphi 0, %s18
    %s21 = sphi 0, %s19
    %s22 = sphi 0, %s20
    %s34 = sphi 0, %s36
    %s37 = sphi 0, %s34
    %s38 = sphi 0, %s37
    %s54 = sphi 0, %s38
    %s70 = sphi 0, %s72
    %s73 = sphi 0, %s70
    %s74 = sphi 0, %s73
    %s90 = sphi 0, %s74
    %s106 = sphi 0, %s108
    %s109 = sphi 0, %s106
    %s110 = sphi 0, %s109
    %s126 = sphi 0, %s110
    %s130 = sphi 0, %s130
    %s132 = sphi 0, %s130
    %s133 = sphi 0, %s132
    %s147 = sphi 0, %s133
    %s155 = sphi 0, %s157
    %s158 = sphi 0, %s155
    %s159 = sphi 0, %s158
    %s175 = sphi 0, %s159
  $region4: #{downsample_forward.1} parent=0 // loop_header_branch
    %13 = sbr.rel (%p11) target = $region8
  $region5: #{downsample_forward.1} parent=0 // loop_body
    %s15 = ssub.s32 %s10, 1
    %s16 = ssub.s32 %s10, 2
    %s23 = sadd.s32 1, %s18
    %p24 = scmp.ge.s32.totalorder %s23, 1
    %s25 = scalar_select %p24, 0, %s23
    %s26 = sadd.s32 1, %s17
    %s27 = scalar_select %p24, %s26, %s17
    %p28 = scmp.ge.s32.totalorder %s27, 2
    %s29 = scalar_select %p28, 0, %s27
    %s30 = ssub.s32 %s17, %s29
    %s31 = ssub.s32 %s18, %s25
    %s32 = sor.u32 %s30, %s31
    %p33 = scmp.eq.s32.totalorder %s32, 0
    %s35 = sadd.s32 %s34, 1
    %s36 = scalar_select %p33, %s34, %s35
    %p39 = pneg %p33
    %p40 = scmp.eq.s32.totalorder %s10, 1
    %p41 = por %p39, %p40
    %p42 = scmp.ne.s32.totalorder %s34, %s37
    %p43 = scmp.eq.s32.totalorder %s10, 0
    %p44 = por %p42, %p43
    %p45 = scmp.ne.s32.totalorder %s34, %s37
    %p46 = scmp.eq.s32.totalorder %s15, 1
    %p47 = por %p45, %p46
    %p48 = scmp.ne.s32.totalorder %s37, %s38
    %p49 = scmp.eq.s32.totalorder %s15, 0
    %p50 = por %p48, %p49
    %p51 = scmp.ne.s32.totalorder %s37, %s38
    %p52 = scmp.eq.s32.totalorder %s16, 1
    %p53 = por %p51, %p52
    %p55 = scmp.ne.s32.totalorder %s38, %s54
    %p56 = scmp.eq.s32.totalorder %s16, 0
    %p57 = por %p55, %p56
    %s58 = smul.u32 %s18, 16
    %s59 = ssub.s32 %s58, 1
    %p60 = scmp.gt.s32.totalorder %s59, 0
    %s61 = scalar_select %p60, %s59, 0
    %s62 = smul.u32 %s25, 16
    %s63 = ssub.s32 %s62, 1
    %p64 = scmp.gt.s32.totalorder %s63, 0
    %s65 = scalar_select %p64, %s63, 0
    %s66 = ssub.s32 %s17, %s29
    %s67 = ssub.s32 %s61, %s65
    %s68 = sor.u32 %s66, %s67
    %p69 = scmp.eq.s32.totalorder %s68, 0
    %s71 = sadd.s32 %s70, 1
    %s72 = scalar_select %p69, %s70, %s71
    %p75 = pneg %p69
    %p76 = scmp.eq.s32.totalorder %s10, 1
    %p77 = por %p75, %p76
    %p78 = scmp.ne.s32.totalorder %s70, %s73
    %p79 = scmp.eq.s32.totalorder %s10, 0
    %p80 = por %p78, %p79
    %p81 = scmp.ne.s32.totalorder %s70, %s73
    %p82 = scmp.eq.s32.totalorder %s15, 1
    %p83 = por %p81, %p82
    %p84 = scmp.ne.s32.totalorder %s73, %s74
    %p85 = scmp.eq.s32.totalorder %s15, 0
    %p86 = por %p84, %p85
    %p87 = scmp.ne.s32.totalorder %s73, %s74
    %p88 = scmp.eq.s32.totalorder %s16, 1
    %p89 = por %p87, %p88
    %p91 = scmp.ne.s32.totalorder %s74, %s90
    %p92 = scmp.eq.s32.totalorder %s16, 0
    %p93 = por %p91, %p92
    %s94 = sadd.s32 %s18, 1
    %s95 = smul.u32 %s94, 16
    %p96 = scmp.lt.s32.totalorder %s95, 15
    %s97 = scalar_select %p96, %s95, 15
    %s98 = sadd.s32 %s25, 1
    %s99 = smul.u32 %s98, 16
    %p100 = scmp.lt.s32.totalorder %s99, 15
    %s101 = scalar_select %p100, %s99, 15
    %s102 = ssub.s32 %s17, %s29
    %s103 = ssub.s32 %s97, %s101
    %s104 = sor.u32 %s102, %s103
    %p105 = scmp.eq.s32.totalorder %s104, 0
    %s107 = sadd.s32 %s106, 1
    %s108 = scalar_select %p105, %s106, %s107
    %p111 = pneg %p105
    %p112 = scmp.eq.s32.totalorder %s10, 1
    %p113 = por %p111, %p112
    %p114 = scmp.ne.s32.totalorder %s106, %s109
    %p115 = scmp.eq.s32.totalorder %s10, 0
    %p116 = por %p114, %p115
    %p117 = scmp.ne.s32.totalorder %s106, %s109
    %p118 = scmp.eq.s32.totalorder %s15, 1
    %p119 = por %p117, %p118
    %p120 = scmp.ne.s32.totalorder %s109, %s110
    %p121 = scmp.eq.s32.totalorder %s15, 0
    %p122 = por %p120, %p121
    %p123 = scmp.ne.s32.totalorder %s109, %s110
    %p124 = scmp.eq.s32.totalorder %s16, 1
    %p125 = por %p123, %p124
    %p127 = scmp.ne.s32.totalorder %s110, %s126
    %p128 = scmp.eq.s32.totalorder %s16, 0
    %p129 = por %p127, %p128
    %s131 = sadd.s32 %s130, 1
    %p134 = scmp.eq.s32.totalorder %s10, 1
    %p135 = scmp.ne.s32.totalorder %s130, %s132
    %p136 = scmp.eq.s32.totalorder %s10, 0
    %p137 = por %p135, %p136
    %p138 = scmp.ne.s32.totalorder %s130, %s132
    %p139 = scmp.eq.s32.totalorder %s15, 1
    %p140 = por %p138, %p139
    %p141 = scmp.ne.s32.totalorder %s132, %s133
    %p142 = scmp.eq.s32.totalorder %s15, 0
    %p143 = por %p141, %p142
    %p144 = scmp.ne.s32.totalorder %s132, %s133
    %p145 = scmp.eq.s32.totalorder %s16, 1
    %p146 = por %p144, %p145
    %p148 = scmp.ne.s32.totalorder %s133, %s147
    %p149 = scmp.eq.s32.totalorder %s16, 0
    %p150 = por %p148, %p149
    %s151 = ssub.s32 %s17, %s29
    %s152 = ssub.s32 %s18, %s25
    %s153 = sor.u32 %s151, %s152
    %p154 = scmp.eq.s32.totalorder %s153, 0
    %s156 = sadd.s32 %s155, 1
    %s157 = scalar_select %p154, %s155, %s156
    %p160 = pneg %p154
    %p161 = scmp.eq.s32.totalorder %s10, 1
    %p162 = por %p160, %p161
    %p163 = scmp.ne.s32.totalorder %s155, %s158
    %p164 = scmp.eq.s32.totalorder %s10, 0
    %p165 = por %p163, %p164
    %p166 = scmp.ne.s32.totalorder %s155, %s158
    %p167 = scmp.eq.s32.totalorder %s15, 1
    %p168 = por %p166, %p167
    %p169 = scmp.ne.s32.totalorder %s158, %s159
    %p170 = scmp.eq.s32.totalorder %s15, 0
    %p171 = por %p169, %p170
    %p172 = scmp.ne.s32.totalorder %s158, %s159
    %p173 = scmp.eq.s32.totalorder %s16, 1
    %p174 = por %p172, %p173
    %p176 = scmp.ne.s32.totalorder %s159, %s175
    %p177 = scmp.eq.s32.totalorder %s16, 0
    %p178 = por %p176, %p177
    %p179 = scmp.le.s32.totalorder 1, %s10
    %p180 = scmp.lt.s32.totalorder %s10, 3
    %p181 = pnand %p179, %p180
    %p182 = pneg %p181
    // Predicated region
    $region9: #{downsample_forward.1} parent=5 // pred_check
      _
    $region10: #{downsample_forward.1} parent=5 // pred_check_branch
      %184 = sbr.rel (%p181) target = $region12
    $region11: #{downsample_forward.1} parent=5 // pred_region
      %s185 = ssub.s32 %s10, 1
      // Predicated region
      $region13: #{downsample_forward.1} parent=11 // pred_check
        %p186 = pneg %p143
      $region14: #{downsample_forward.1} parent=11 // pred_check_branch
        %188 = sbr.rel (%p186) target = $region16
      $region15: #{downsample_forward.1} parent=11 // pred_region
        _
      $region16: #{downsample_forward.1} parent=11 // pred_fallthru
        _
    $region12: #{downsample_forward.1} parent=5 // pred_fallthru
      _
    %p189 = scmp.lt.s32.totalorder %s10, 2
    // Predicated region
    $region17: #{downsample_forward.1} parent=5 // pred_check
      %p190 = pneg %p189
    $region18: #{downsample_forward.1} parent=5 // pred_check_branch
      %192 = sbr.rel (%p190) target = $region20
    $region19: #{downsample_forward.1} parent=5 // pred_region
      // Predicated region
      $region21: #{downsample_forward.1} parent=19 // pred_check
        %p193 = pneg %p44
      $region22: #{downsample_forward.1} parent=19 // pred_check_branch
        %195 = sbr.rel (%p193) target = $region24
      $region23: #{downsample_forward.1} parent=19 // pred_region
        %s196 = smul.u32 16, %s18
        %p197 = scmp.lt.s32.totalorder %s17, 1
        %s198 = scalar_select %p197, %s17, 1
        %p199 = scmp.lt.s32.totalorder %s196, 15
        %s200 = scalar_select %p199, %s196, 15
        %s201 = smul.addr %s198, 16
        %s202 = sadd.s32 %s200, %s201
        %s203 = smul.addr %s202, 8
        %s204 = scalar_lea.vmem %s0, %s203
        %s205 = smul.u32 16, %s18
      $region24: #{downsample_forward.1} parent=19 // pred_fallthru
        _
      // Predicated region
      $region25: #{downsample_forward.1} parent=19 // pred_check
        %p206 = pneg %p80
      $region26: #{downsample_forward.1} parent=19 // pred_check_branch
        %208 = sbr.rel (%p206) target = $region28
      $region27: #{downsample_forward.1} parent=19 // pred_region
        %s209 = smul.u32 %s18, 16
        %s210 = ssub.s32 %s209, 1
        %p211 = scmp.gt.s32.totalorder %s210, 0
        %s212 = scalar_select %p211, %s210, 0
        %p213 = scmp.lt.s32.totalorder %s17, 1
        %s214 = scalar_select %p213, %s17, 1
        %p215 = scmp.lt.s32.totalorder %s212, 15
        %s216 = scalar_select %p215, %s212, 15
        %s217 = smul.addr %s214, 16
        %s218 = sadd.s32 %s216, %s217
        %s219 = smul.addr %s218, 8
        %s220 = scalar_lea.vmem %s1, %s219
        %s221 = smul.u32 %s18, 16
        %s222 = ssub.s32 %s221, 1
        %p223 = scmp.gt.s32.totalorder %s222, 0
        %s224 = scalar_select %p223, %s222, 0
      $region28: #{downsample_forward.1} parent=19 // pred_fallthru
        _
      // Predicated region
      $region29: #{downsample_forward.1} parent=19 // pred_check
        %p225 = pneg %p116
      $region30: #{downsample_forward.1} parent=19 // pred_check_branch
        %227 = sbr.rel (%p225) target = $region32
      $region31: #{downsample_forward.1} parent=19 // pred_region
        %s228 = sadd.s32 %s18, 1
        %s229 = smul.u32 %s228, 16
        %p230 = scmp.lt.s32.totalorder %s229, 15
        %s231 = scalar_select %p230, %s229, 15
        %p232 = scmp.lt.s32.totalorder %s17, 1
        %s233 = scalar_select %p232, %s17, 1
        %p234 = scmp.lt.s32.totalorder %s231, 15
        %s235 = scalar_select %p234, %s231, 15
        %s236 = smul.addr %s233, 16
        %s237 = sadd.s32 %s235, %s236
        %s238 = smul.addr %s237, 8
        %s239 = scalar_lea.vmem %s2, %s238
        %s240 = sadd.s32 %s18, 1
        %s241 = smul.u32 %s240, 16
        %p242 = scmp.lt.s32.totalorder %s241, 15
        %s243 = scalar_select %p242, %s241, 15
      $region32: #{downsample_forward.1} parent=19 // pred_fallthru
        _
    $region20: #{downsample_forward.1} parent=5 // pred_fallthru
      _
    %p244 = scmp.le.s32.totalorder 1, %s10
    %p245 = scmp.lt.s32.totalorder %s10, 3
    %p246 = pnand %p244, %p245
    %p247 = pneg %p246
    // Predicated region
    $region33: #{downsample_forward.1} parent=5 // pred_check
      _
    $region34: #{downsample_forward.1} parent=5 // pred_check_branch
      %249 = sbr.rel (%p246) target = $region36
    $region35: #{downsample_forward.1} parent=5 // pred_region
      %s250 = ssub.s32 %s10, 1
      %s251 = smul.u32 16, %s20
      %p252 = scmp.lt.s32.totalorder %s19, 1
      %s253 = scalar_select %p252, %s19, 1
      %p254 = scmp.lt.s32.totalorder %s251, 15
      %s255 = scalar_select %p254, %s251, 15
      %s256 = smul.addr %s253, 16
      %s257 = sadd.s32 %s255, %s256
      %s258 = smul.addr %s257, 8
      %s259 = scalar_lea.vmem %s0, %s258
      %p260 = pneg %p50
      %p261 = pneg %p47
      %s262 = smul.u32 %s20, 16
      %s263 = ssub.s32 %s262, 1
      %p264 = scmp.gt.s32.totalorder %s263, 0
      %s265 = scalar_select %p264, %s263, 0
      %p266 = scmp.lt.s32.totalorder %s19, 1
      %s267 = scalar_select %p266, %s19, 1
      %p268 = scmp.lt.s32.totalorder %s265, 15
      %s269 = scalar_select %p268, %s265, 15
      %s270 = smul.addr %s267, 16
      %s271 = sadd.s32 %s269, %s270
      %s272 = smul.addr %s271, 8
      %s273 = scalar_lea.vmem %s1, %s272
      %p274 = pneg %p86
      %p275 = pneg %p83
      %s276 = sadd.s32 %s20, 1
      %s277 = smul.u32 %s276, 16
      %p278 = scmp.lt.s32.totalorder %s277, 15
      %s279 = scalar_select %p278, %s277, 15
      %p280 = scmp.lt.s32.totalorder %s19, 1
      %s281 = scalar_select %p280, %s19, 1
      %p282 = scmp.lt.s32.totalorder %s279, 15
      %s283 = scalar_select %p282, %s279, 15
      %s284 = smul.addr %s281, 16
      %s285 = sadd.s32 %s283, %s284
      %s286 = smul.addr %s285, 8
      %s287 = scalar_lea.vmem %s2, %s286
      %p288 = pneg %p122
      %p289 = pneg %p119
      %p290 = pneg %p143
      %p291 = pneg %p140
      %p292 = pneg %p171
      %p293 = pneg %p168
      %s294 = smul.u32 8, %s20
      %p295 = scmp.lt.s32.totalorder %s19, 1
      %s296 = scalar_select %p295, %s19, 1
      %p297 = scmp.lt.s32.totalorder %s294, 7
      %s298 = scalar_select %p297, %s294, 7
      %s299 = smul.addr %s296, 8
      %s300 = sadd.s32 %s298, %s299
      %s301 = smul.addr %s300, 8
      %s302 = scalar_lea.vmem %s4, %s301
      %s303 = smul.u32 16, %s20
      %p304 = scmp.lt.s32.totalorder %s19, 1
      %s305 = scalar_select %p304, %s19, 1
      %p306 = scmp.lt.s32.totalorder %s303, 15
      %s307 = scalar_select %p306, %s303, 15
      %s308 = smul.addr %s305, 16
      %s309 = sadd.s32 %s307, %s308
      %s310 = smul.addr %s309, 8
      %s311 = scalar_lea.vmem %s0, %s310
      %s312 = smul.u32 16, %s20
      %s313 = smul.u32 %s20, 16
      %s314 = ssub.s32 %s313, 1
      %p315 = scmp.gt.s32.totalorder %s314, 0
      %s316 = scalar_select %p315, %s314, 0
      %p317 = scmp.lt.s32.totalorder %s19, 1
      %s318 = scalar_select %p317, %s19, 1
      %p319 = scmp.lt.s32.totalorder %s316, 15
      %s320 = scalar_select %p319, %s316, 15
      %s321 = smul.addr %s318, 16
      %s322 = sadd.s32 %s320, %s321
      %s323 = smul.addr %s322, 8
      %s324 = scalar_lea.vmem %s1, %s323
      %s325 = smul.u32 %s20, 16
      %s326 = ssub.s32 %s325, 1
      %p327 = scmp.gt.s32.totalorder %s326, 0
      %s328 = scalar_select %p327, %s326, 0
      %s329 = sadd.s32 %s20, 1
      %s330 = smul.u32 %s329, 16
      %p331 = scmp.lt.s32.totalorder %s330, 15
      %s332 = scalar_select %p331, %s330, 15
      %p333 = scmp.lt.s32.totalorder %s19, 1
      %s334 = scalar_select %p333, %s19, 1
      %p335 = scmp.lt.s32.totalorder %s332, 15
      %s336 = scalar_select %p335, %s332, 15
      %s337 = smul.addr %s334, 16
      %s338 = sadd.s32 %s336, %s337
      %s339 = smul.addr %s338, 8
      %s340 = scalar_lea.vmem %s2, %s339
      %s341 = sadd.s32 %s20, 1
      %s342 = smul.u32 %s341, 16
      %p343 = scmp.lt.s32.totalorder %s342, 15
      %s344 = scalar_select %p343, %s342, 15
      %s345 = smul.u32 8, %s20
      %p346 = scmp.lt.s32.totalorder %s19, 1
      %s347 = scalar_select %p346, %s19, 1
      %p348 = scmp.lt.s32.totalorder %s345, 7
      %s349 = scalar_select %p348, %s345, 7
      %s350 = smul.addr %s347, 8
      %s351 = sadd.s32 %s349, %s350
      %s352 = smul.addr %s351, 8
      %s353 = scalar_lea.vmem %s4, %s352
      %s354 = smul.u32 8, %s20
      %v355 = vld [vmem:[%s311] sm:$0xff]
      %v356 = vld [vmem:[%s311 + $0x8] sm:$0xff]
      %v357 = vld [vmem:[%s311 + $0x10] sm:$0xff]
      %v358 = vld [vmem:[%s311 + $0x18] sm:$0xff]
      %v359 = vld [vmem:[%s311 + $0x20] sm:$0xff]
      %v360 = vld [vmem:[%s311 + $0x28] sm:$0xff]
      %v361 = vld [vmem:[%s311 + $0x30] sm:$0xff]
      %v362 = vld [vmem:[%s311 + $0x38] sm:$0xff]
      %v363 = vld [vmem:[%s311 + $0x40] sm:$0xff]
      %v364 = vld [vmem:[%s311 + $0x48] sm:$0xff]
      %v365 = vld [vmem:[%s311 + $0x50] sm:$0xff]
      %v366 = vld [vmem:[%s311 + $0x58] sm:$0xff]
      %v367 = vld [vmem:[%s311 + $0x60] sm:$0xff]
      %v368 = vld [vmem:[%s311 + $0x68] sm:$0xff]
      %v369 = vld [vmem:[%s311 + $0x70] sm:$0xff]
      %v370 = vld [vmem:[%s311 + $0x78] sm:$0xff]
      %v371 = vld [vmem:[%s324] sm:$0xff]
      %p372 = scmp.gt.s32.totalorder %s20, 0
      %s373 = scalar_select %p372, 1, 0
      %s374 = scvt.s32.f32 %s373
      %v375 = vstv %s374
      %v376 = vmul.f32 %v371, %v375
      %v377 = vld [vmem:[%s340] sm:$0xff]
      %p378 = scmp.lt.s32.totalorder %s20, 0
      %s379 = scalar_select %p378, 1, 0
      %s380 = scvt.s32.f32 %s379
      %v381 = vstv %s380
      %v382 = vmul.f32 %v377, %v381
      %v401 = vrot.slane %v376, 7
      %v402 = vrot.slane %v355, 7
      %v403 = vrot.slane %v356, 7
      %v404 = vrot.slane %v357, 7
      %v405 = vrot.slane %v358, 7
      %v406 = vrot.slane %v359, 7
      %v407 = vrot.slane %v360, 7
      %v408 = vrot.slane %v361, 7
      %v409 = vrot.slane %v362, 7
      %v410 = vrot.slane %v363, 7
      %v411 = vrot.slane %v364, 7
      %v412 = vrot.slane %v365, 7
      %v413 = vrot.slane %v366, 7
      %v414 = vrot.slane %v367, 7
      %v415 = vrot.slane %v368, 7
      %v416 = vrot.slane %v369, 7
      %v417 = vrot.slane %v370, 7
      %v418 = vrot.slane %v382, 7
      %vm437 = vcmask 1040384
      %v438 = vsel %vm437, 0.0, %v401
      %v439 = vsel %vm437, 0.0, %v402
      %v440 = vsel %vm437, 0.0, %v403
      %v441 = vsel %vm437, 0.0, %v404
      %v442 = vsel %vm437, 0.0, %v405
      %v443 = vsel %vm437, 0.0, %v406
      %v444 = vsel %vm437, 0.0, %v407
      %v445 = vsel %vm437, 0.0, %v408
      %v446 = vsel %vm437, 0.0, %v409
      %v447 = vsel %vm437, 0.0, %v410
      %v448 = vsel %vm437, 0.0, %v411
      %v449 = vsel %vm437, 0.0, %v412
      %v450 = vsel %vm437, 0.0, %v413
      %v451 = vsel %vm437, 0.0, %v414
      %v452 = vsel %vm437, 0.0, %v415
      %v453 = vsel %vm437, 0.0, %v416
      %v454 = vsel %vm437, 0.0, %v417
      %v455 = vsel %vm437, 0.0, %v418
      %v456 = vsel %vm437, %v401, 0.0
      %v457 = vsel %vm437, %v402, 0.0
      %v458 = vsel %vm437, %v403, 0.0
      %v459 = vsel %vm437, %v404, 0.0
      %v460 = vsel %vm437, %v405, 0.0
      %v461 = vsel %vm437, %v406, 0.0
      %v462 = vsel %vm437, %v407, 0.0
      %v463 = vsel %vm437, %v408, 0.0
      %v464 = vsel %vm437, %v409, 0.0
      %v465 = vsel %vm437, %v410, 0.0
      %v466 = vsel %vm437, %v411, 0.0
      %v467 = vsel %vm437, %v412, 0.0
      %v468 = vsel %vm437, %v413, 0.0
      %v469 = vsel %vm437, %v414, 0.0
      %v470 = vsel %vm437, %v415, 0.0
      %v471 = vsel %vm437, %v416, 0.0
      %v472 = vsel %vm437, %v417, 0.0
      %v473 = vsel %vm437, %v418, 0.0
      %482 = vrot.lane.b32.xlu0 %v438, 124
      %v483 = vpop.permute.xlu0 %482
      %484 = vrot.lane.b32.xlu0 %v440, 124
      %v485 = vpop.permute.xlu0 %484
      %486 = vrot.lane.b32.xlu0 %v442, 124
      %v487 = vpop.permute.xlu0 %486
      %488 = vrot.lane.b32.xlu0 %v444, 124
      %v489 = vpop.permute.xlu0 %488
      %490 = vrot.lane.b32.xlu0 %v446, 124
      %v491 = vpop.permute.xlu0 %490
      %492 = vrot.lane.b32.xlu0 %v448, 124
      %v493 = vpop.permute.xlu0 %492
      %494 = vrot.lane.b32.xlu0 %v450, 124
      %v495 = vpop.permute.xlu0 %494
      %496 = vrot.lane.b32.xlu0 %v452, 124
      %v497 = vpop.permute.xlu0 %496
      %vm514 = vcmask 1046528
      %v515 = vrot.slane %v438, 1
      %v516 = vrot.slane %v456, 1
      %v517 = vsel %vm514, %v515, %v516
      %v518 = vrot.slane %v440, 1
      %v519 = vrot.slane %v458, 1
      %v520 = vsel %vm514, %v518, %v519
      %v521 = vrot.slane %v442, 1
      %v522 = vrot.slane %v460, 1
      %v523 = vsel %vm514, %v521, %v522
      %v524 = vrot.slane %v444, 1
      %v525 = vrot.slane %v462, 1
      %v526 = vsel %vm514, %v524, %v525
      %v527 = vrot.slane %v446, 1
      %v528 = vrot.slane %v464, 1
      %v529 = vsel %vm514, %v527, %v528
      %v530 = vrot.slane %v448, 1
      %v531 = vrot.slane %v466, 1
      %v532 = vsel %vm514, %v530, %v531
      %v533 = vrot.slane %v450, 1
      %v534 = vrot.slane %v468, 1
      %v535 = vsel %vm514, %v533, %v534
      %v536 = vrot.slane %v452, 1
      %v537 = vrot.slane %v470, 1
      %v538 = vsel %vm514, %v536, %v537
      %539 = vrot.lane.b32.xlu0 %v517, 4
      %v540 = vpop.permute.xlu0 %539
      %541 = vrot.lane.b32.xlu0 %v520, 4
      %v542 = vpop.permute.xlu0 %541
      %543 = vrot.lane.b32.xlu0 %v523, 4
      %v544 = vpop.permute.xlu0 %543
      %545 = vrot.lane.b32.xlu0 %v526, 4
      %v546 = vpop.permute.xlu0 %545
      %547 = vrot.lane.b32.xlu0 %v529, 4
      %v548 = vpop.permute.xlu0 %547
      %549 = vrot.lane.b32.xlu0 %v532, 4
      %v550 = vpop.permute.xlu0 %549
      %551 = vrot.lane.b32.xlu0 %v535, 4
      %v552 = vpop.permute.xlu0 %551
      %553 = vrot.lane.b32.xlu0 %v538, 4
      %v554 = vpop.permute.xlu0 %553
      %vm563 = vcmask 1045504
      %v564 = vrot.slane %v438, 2
      %v565 = vrot.slane %v456, 2
      %v566 = vsel %vm563, %v564, %v565
      %v567 = vrot.slane %v440, 2
      %v568 = vrot.slane %v458, 2
      %v569 = vsel %vm563, %v567, %v568
      %v570 = vrot.slane %v442, 2
      %v571 = vrot.slane %v460, 2
      %v572 = vsel %vm563, %v570, %v571
      %v573 = vrot.slane %v444, 2
      %v574 = vrot.slane %v462, 2
      %v575 = vsel %vm563, %v573, %v574
      %v576 = vrot.slane %v446, 2
      %v577 = vrot.slane %v464, 2
      %v578 = vsel %vm563, %v576, %v577
      %v579 = vrot.slane %v448, 2
      %v580 = vrot.slane %v466, 2
      %v581 = vsel %vm563, %v579, %v580
      %v582 = vrot.slane %v450, 2
      %v583 = vrot.slane %v468, 2
      %v584 = vsel %vm563, %v582, %v583
      %v585 = vrot.slane %v452, 2
      %v586 = vrot.slane %v470, 2
      %v587 = vsel %vm563, %v585, %v586
      %588 = vrot.lane.b32.xlu0 %v566, 12
      %v589 = vpop.permute.xlu0 %588
      %590 = vrot.lane.b32.xlu0 %v569, 12
      %v591 = vpop.permute.xlu0 %590
      %592 = vrot.lane.b32.xlu0 %v572, 12
      %v593 = vpop.permute.xlu0 %592
      %594 = vrot.lane.b32.xlu0 %v575, 12
      %v595 = vpop.permute.xlu0 %594
      %596 = vrot.lane.b32.xlu0 %v578, 12
      %v597 = vpop.permute.xlu0 %596
      %598 = vrot.lane.b32.xlu0 %v581, 12
      %v599 = vpop.permute.xlu0 %598
      %600 = vrot.lane.b32.xlu0 %v584, 12
      %v601 = vpop.permute.xlu0 %600
      %602 = vrot.lane.b32.xlu0 %v587, 12
      %v603 = vpop.permute.xlu0 %602
      %620 = vrot.lane.b32.xlu0 %v439, 12
      %v621 = vpop.permute.xlu0 %620
      %622 = vrot.lane.b32.xlu0 %v441, 12
      %v623 = vpop.permute.xlu0 %622
      %624 = vrot.lane.b32.xlu0 %v443, 12
      %v625 = vpop.permute.xlu0 %624
      %626 = vrot.lane.b32.xlu0 %v445, 12
      %v627 = vpop.permute.xlu0 %626
      %628 = vrot.lane.b32.xlu0 %v447, 12
      %v629 = vpop.permute.xlu0 %628
      %630 = vrot.lane.b32.xlu0 %v449, 12
      %v631 = vpop.permute.xlu0 %630
      %632 = vrot.lane.b32.xlu0 %v451, 12
      %v633 = vpop.permute.xlu0 %632
      %634 = vrot.lane.b32.xlu0 %v453, 12
      %v635 = vpop.permute.xlu0 %634
      %v652 = vrot.slane %v439, 1
      %v653 = vrot.slane %v457, 1
      %v654 = vsel %vm514, %v652, %v653
      %v655 = vrot.slane %v441, 1
      %v656 = vrot.slane %v459, 1
      %v657 = vsel %vm514, %v655, %v656
      %v658 = vrot.slane %v443, 1
      %v659 = vrot.slane %v461, 1
      %v660 = vsel %vm514, %v658, %v659
      %v661 = vrot.slane %v445, 1
      %v662 = vrot.slane %v463, 1
      %v663 = vsel %vm514, %v661, %v662
      %v664 = vrot.slane %v447, 1
      %v665 = vrot.slane %v465, 1
      %v666 = vsel %vm514, %v664, %v665
      %v667 = vrot.slane %v449, 1
      %v668 = vrot.slane %v467, 1
      %v669 = vsel %vm514, %v667, %v668
      %v670 = vrot.slane %v451, 1
      %v671 = vrot.slane %v469, 1
      %v672 = vsel %vm514, %v670, %v671
      %v673 = vrot.slane %v453, 1
      %v674 = vrot.slane %v471, 1
      %v675 = vsel %vm514, %v673, %v674
      %676 = vrot.lane.b32.xlu0 %v654, 20
      %v677 = vpop.permute.xlu0 %676
      %678 = vrot.lane.b32.xlu0 %v657, 20
      %v679 = vpop.permute.xlu0 %678
      %680 = vrot.lane.b32.xlu0 %v660, 20
      %v681 = vpop.permute.xlu0 %680
      %682 = vrot.lane.b32.xlu0 %v663, 20
      %v683 = vpop.permute.xlu0 %682
      %684 = vrot.lane.b32.xlu0 %v666, 20
      %v685 = vpop.permute.xlu0 %684
      %686 = vrot.lane.b32.xlu0 %v669, 20
      %v687 = vpop.permute.xlu0 %686
      %688 = vrot.lane.b32.xlu0 %v672, 20
      %v689 = vpop.permute.xlu0 %688
      %690 = vrot.lane.b32.xlu0 %v675, 20
      %v691 = vpop.permute.xlu0 %690
      %v700 = vrot.slane %v439, 2
      %v701 = vrot.slane %v457, 2
      %v702 = vsel %vm563, %v700, %v701
      %v703 = vrot.slane %v441, 2
      %v704 = vrot.slane %v459, 2
      %v705 = vsel %vm563, %v703, %v704
      %v706 = vrot.slane %v443, 2
      %v707 = vrot.slane %v461, 2
      %v708 = vsel %vm563, %v706, %v707
      %v709 = vrot.slane %v445, 2
      %v710 = vrot.slane %v463, 2
      %v711 = vsel %vm563, %v709, %v710
      %v712 = vrot.slane %v447, 2
      %v713 = vrot.slane %v465, 2
      %v714 = vsel %vm563, %v712, %v713
      %v715 = vrot.slane %v449, 2
      %v716 = vrot.slane %v467, 2
      %v717 = vsel %vm563, %v715, %v716
      %v718 = vrot.slane %v451, 2
      %v719 = vrot.slane %v469, 2
      %v720 = vsel %vm563, %v718, %v719
      %v721 = vrot.slane %v453, 2
      %v722 = vrot.slane %v471, 2
      %v723 = vsel %vm563, %v721, %v722
      %724 = vrot.lane.b32.xlu0 %v702, 28
      %v725 = vpop.permute.xlu0 %724
      %726 = vrot.lane.b32.xlu0 %v705, 28
      %v727 = vpop.permute.xlu0 %726
      %728 = vrot.lane.b32.xlu0 %v708, 28
      %v729 = vpop.permute.xlu0 %728
      %730 = vrot.lane.b32.xlu0 %v711, 28
      %v731 = vpop.permute.xlu0 %730
      %732 = vrot.lane.b32.xlu0 %v714, 28
      %v733 = vpop.permute.xlu0 %732
      %734 = vrot.lane.b32.xlu0 %v717, 28
      %v735 = vpop.permute.xlu0 %734
      %736 = vrot.lane.b32.xlu0 %v720, 28
      %v737 = vpop.permute.xlu0 %736
      %738 = vrot.lane.b32.xlu0 %v723, 28
      %v739 = vpop.permute.xlu0 %738
      %749 = vrot.lane.b32.xlu0 %v440, 28
      %v750 = vpop.permute.xlu0 %749
      %751 = vrot.lane.b32.xlu0 %v442, 28
      %v752 = vpop.permute.xlu0 %751
      %753 = vrot.lane.b32.xlu0 %v444, 28
      %v754 = vpop.permute.xlu0 %753
      %755 = vrot.lane.b32.xlu0 %v446, 28
      %v756 = vpop.permute.xlu0 %755
      %757 = vrot.lane.b32.xlu0 %v448, 28
      %v758 = vpop.permute.xlu0 %757
      %759 = vrot.lane.b32.xlu0 %v450, 28
      %v760 = vpop.permute.xlu0 %759
      %761 = vrot.lane.b32.xlu0 %v452, 28
      %v762 = vpop.permute.xlu0 %761
      %763 = vrot.lane.b32.xlu0 %v454, 28
      %v764 = vpop.permute.xlu0 %763
      %v774 = vrot.slane %v454, 1
      %v775 = vrot.slane %v472, 1
      %v776 = vsel %vm514, %v774, %v775
      %777 = vrot.lane.b32.xlu0 %v520, 36
      %v778 = vpop.permute.xlu0 %777
      %779 = vrot.lane.b32.xlu0 %v523, 36
      %v780 = vpop.permute.xlu0 %779
      %781 = vrot.lane.b32.xlu0 %v526, 36
      %v782 = vpop.permute.xlu0 %781
      %783 = vrot.lane.b32.xlu0 %v529, 36
      %v784 = vpop.permute.xlu0 %783
      %785 = vrot.lane.b32.xlu0 %v532, 36
      %v786 = vpop.permute.xlu0 %785
      %787 = vrot.lane.b32.xlu0 %v535, 36
      %v788 = vpop.permute.xlu0 %787
      %789 = vrot.lane.b32.xlu0 %v538, 36
      %v790 = vpop.permute.xlu0 %789
      %791 = vrot.lane.b32.xlu0 %v776, 36
      %v792 = vpop.permute.xlu0 %791
      %v801 = vrot.slane %v454, 2
      %v802 = vrot.slane %v472, 2
      %v803 = vsel %vm563, %v801, %v802
      %804 = vrot.lane.b32.xlu0 %v569, 44
      %v805 = vpop.permute.xlu0 %804
      %806 = vrot.lane.b32.xlu0 %v572, 44
      %v807 = vpop.permute.xlu0 %806
      %808 = vrot.lane.b32.xlu0 %v575, 44
      %v809 = vpop.permute.xlu0 %808
      %810 = vrot.lane.b32.xlu0 %v578, 44
      %v811 = vpop.permute.xlu0 %810
      %812 = vrot.lane.b32.xlu0 %v581, 44
      %v813 = vpop.permute.xlu0 %812
      %814 = vrot.lane.b32.xlu0 %v584, 44
      %v815 = vpop.permute.xlu0 %814
      %816 = vrot.lane.b32.xlu0 %v587, 44
      %v817 = vpop.permute.xlu0 %816
      %818 = vrot.lane.b32.xlu0 %v803, 44
      %v819 = vpop.permute.xlu0 %818
      %829 = vrot.lane.b32.xlu0 %v441, 44
      %v830 = vpop.permute.xlu0 %829
      %831 = vrot.lane.b32.xlu0 %v443, 44
      %v832 = vpop.permute.xlu0 %831
      %833 = vrot.lane.b32.xlu0 %v445, 44
      %v834 = vpop.permute.xlu0 %833
      %835 = vrot.lane.b32.xlu0 %v447, 44
      %v836 = vpop.permute.xlu0 %835
      %837 = vrot.lane.b32.xlu0 %v449, 44
      %v838 = vpop.permute.xlu0 %837
      %839 = vrot.lane.b32.xlu0 %v451, 44
      %v840 = vpop.permute.xlu0 %839
      %841 = vrot.lane.b32.xlu0 %v453, 44
      %v842 = vpop.permute.xlu0 %841
      %843 = vrot.lane.b32.xlu0 %v455, 44
      %v844 = vpop.permute.xlu0 %843
      %v854 = vrot.slane %v455, 1
      %v855 = vrot.slane %v473, 1
      %v856 = vsel %vm514, %v854, %v855
      %857 = vrot.lane.b32.xlu0 %v657, 52
      %v858 = vpop.permute.xlu0 %857
      %859 = vrot.lane.b32.xlu0 %v660, 52
      %v860 = vpop.permute.xlu0 %859
      %861 = vrot.lane.b32.xlu0 %v663, 52
      %v862 = vpop.permute.xlu0 %861
      %863 = vrot.lane.b32.xlu0 %v666, 52
      %v864 = vpop.permute.xlu0 %863
      %865 = vrot.lane.b32.xlu0 %v669, 52
      %v866 = vpop.permute.xlu0 %865
      %867 = vrot.lane.b32.xlu0 %v672, 52
      %v868 = vpop.permute.xlu0 %867
      %869 = vrot.lane.b32.xlu0 %v675, 52
      %v870 = vpop.permute.xlu0 %869
      %871 = vrot.lane.b32.xlu0 %v856, 52
      %v872 = vpop.permute.xlu0 %871
      %v881 = vrot.slane %v455, 2
      %v882 = vrot.slane %v473, 2
      %v883 = vsel %vm563, %v881, %v882
      %884 = vrot.lane.b32.xlu0 %v705, 60
      %v885 = vpop.permute.xlu0 %884
      %886 = vrot.lane.b32.xlu0 %v708, 60
      %v887 = vpop.permute.xlu0 %886
      %888 = vrot.lane.b32.xlu0 %v711, 60
      %v889 = vpop.permute.xlu0 %888
      %890 = vrot.lane.b32.xlu0 %v714, 60
      %v891 = vpop.permute.xlu0 %890
      %892 = vrot.lane.b32.xlu0 %v717, 60
      %v893 = vpop.permute.xlu0 %892
      %894 = vrot.lane.b32.xlu0 %v720, 60
      %v895 = vpop.permute.xlu0 %894
      %896 = vrot.lane.b32.xlu0 %v723, 60
      %v897 = vpop.permute.xlu0 %896
      %898 = vrot.lane.b32.xlu0 %v883, 60
      %v899 = vpop.permute.xlu0 %898
      %vm908 = vcmask 31744
      %v909 = vsel %vm908, %v483, %v540
      %v910 = vsel %vm908, %v485, %v542
      %v911 = vsel %vm908, %v487, %v544
      %v912 = vsel %vm908, %v489, %v546
      %v913 = vsel %vm908, %v491, %v548
      %v914 = vsel %vm908, %v493, %v550
      %v915 = vsel %vm908, %v495, %v552
      %v916 = vsel %vm908, %v497, %v554
      %vm917 = vcmask 64512
      %v918 = vsel %vm917, %v909, %v540
      %v919 = vsel %vm917, %v910, %v542
      %v920 = vsel %vm917, %v911, %v544
      %v921 = vsel %vm917, %v912, %v546
      %v922 = vsel %vm917, %v913, %v548
      %v923 = vsel %vm917, %v914, %v550
      %v924 = vsel %vm917, %v915, %v552
      %v925 = vsel %vm917, %v916, %v554
      %vm926 = vcmask 97280
      %v927 = vsel %vm926, %v918, %v589
      %v928 = vsel %vm926, %v919, %v591
      %v929 = vsel %vm926, %v920, %v593
      %v930 = vsel %vm926, %v921, %v595
      %v931 = vsel %vm926, %v922, %v597
      %v932 = vsel %vm926, %v923, %v599
      %v933 = vsel %vm926, %v924, %v601
      %v934 = vsel %vm926, %v925, %v603
      %vm935 = vcmask 130048
      %v936 = vsel %vm935, %v927, %v621
      %v937 = vsel %vm935, %v928, %v623
      %v938 = vsel %vm935, %v929, %v625
      %v939 = vsel %vm935, %v930, %v627
      %v940 = vsel %vm935, %v931, %v629
      %v941 = vsel %vm935, %v932, %v631
      %v942 = vsel %vm935, %v933, %v633
      %v943 = vsel %vm935, %v934, %v635
      %vm944 = vcmask 162816
      %v945 = vsel %vm944, %v936, %v677
      %v946 = vsel %vm944, %v937, %v679
      %v947 = vsel %vm944, %v938, %v681
      %v948 = vsel %vm944, %v939, %v683
      %v949 = vsel %vm944, %v940, %v685
      %v950 = vsel %vm944, %v941, %v687
      %v951 = vsel %vm944, %v942, %v689
      %v952 = vsel %vm944, %v943, %v691
      %vm953 = vcmask 195584
      %v954 = vsel %vm953, %v945, %v677
      %v955 = vsel %vm953, %v946, %v679
      %v956 = vsel %vm953, %v947, %v681
      %v957 = vsel %vm953, %v948, %v683
      %v958 = vsel %vm953, %v949, %v685
      %v959 = vsel %vm953, %v950, %v687
      %v960 = vsel %vm953, %v951, %v689
      %v961 = vsel %vm953, %v952, %v691
      %vm962 = vcmask 228352
      %v963 = vsel %vm962, %v954, %v725
      %v964 = vsel %vm962, %v955, %v727
      %v965 = vsel %vm962, %v956, %v729
      %v966 = vsel %vm962, %v957, %v731
      %v967 = vsel %vm962, %v958, %v733
      %v968 = vsel %vm962, %v959, %v735
      %v969 = vsel %vm962, %v960, %v737
      %v970 = vsel %vm962, %v961, %v739
      %vm971 = vcmask 261120
      %v972 = vsel %vm971, %v963, %v750
      %v973 = vsel %vm971, %v964, %v752
      %v974 = vsel %vm971, %v965, %v754
      %v975 = vsel %vm971, %v966, %v756
      %v976 = vsel %vm971, %v967, %v758
      %v977 = vsel %vm971, %v968, %v760
      %v978 = vsel %vm971, %v969, %v762
      %v979 = vsel %vm971, %v970, %v764
      %vm980 = vcmask 293888
      %v981 = vsel %vm980, %v972, %v778
      %v982 = vsel %vm980, %v973, %v780
      %v983 = vsel %vm980, %v974, %v782
      %v984 = vsel %vm980, %v975, %v784
      %v985 = vsel %vm980, %v976, %v786
      %v986 = vsel %vm980, %v977, %v788
      %v987 = vsel %vm980, %v978, %v790
      %v988 = vsel %vm980, %v979, %v792
      %vm989 = vcmask 326656
      %v990 = vsel %vm989, %v981, %v778
      %v991 = vsel %vm989, %v982, %v780
      %v992 = vsel %vm989, %v983, %v782
      %v993 = vsel %vm989, %v984, %v784
      %v994 = vsel %vm989, %v985, %v786
      %v995 = vsel %vm989, %v986, %v788
      %v996 = vsel %vm989, %v987, %v790
      %v997 = vsel %vm989, %v988, %v792
      %vm998 = vcmask 359424
      %v999 = vsel %vm998, %v990, %v805
      %v1000 = vsel %vm998, %v991, %v807
      %v1001 = vsel %vm998, %v992, %v809
      %v1002 = vsel %vm998, %v993, %v811
      %v1003 = vsel %vm998, %v994, %v813
      %v1004 = vsel %vm998, %v995, %v815
      %v1005 = vsel %vm998, %v996, %v817
      %v1006 = vsel %vm998, %v997, %v819
      %vm1007 = vcmask 392192
      %v1008 = vsel %vm1007, %v999, %v830
      %v1009 = vsel %vm1007, %v1000, %v832
      %v1010 = vsel %vm1007, %v1001, %v834
      %v1011 = vsel %vm1007, %v1002, %v836
      %v1012 = vsel %vm1007, %v1003, %v838
      %v1013 = vsel %vm1007, %v1004, %v840
      %v1014 = vsel %vm1007, %v1005, %v842
      %v1015 = vsel %vm1007, %v1006, %v844
      %vm1016 = vcmask 424960
      %v1017 = vsel %vm1016, %v1008, %v858
      %v1018 = vsel %vm1016, %v1009, %v860
      %v1019 = vsel %vm1016, %v1010, %v862
      %v1020 = vsel %vm1016, %v1011, %v864
      %v1021 = vsel %vm1016, %v1012, %v866
      %v1022 = vsel %vm1016, %v1013, %v868
      %v1023 = vsel %vm1016, %v1014, %v870
      %v1024 = vsel %vm1016, %v1015, %v872
      %vm1025 = vcmask 457728
      %v1026 = vsel %vm1025, %v1017, %v858
      %v1027 = vsel %vm1025, %v1018, %v860
      %v1028 = vsel %vm1025, %v1019, %v862
      %v1029 = vsel %vm1025, %v1020, %v864
      %v1030 = vsel %vm1025, %v1021, %v866
      %v1031 = vsel %vm1025, %v1022, %v868
      %v1032 = vsel %vm1025, %v1023, %v870
      %v1033 = vsel %vm1025, %v1024, %v872
      %vm1034 = vcmask 490496
      %v1035 = vsel %vm1034, %v1026, %v885
      %v1036 = vsel %vm1034, %v1027, %v887
      %v1037 = vsel %vm1034, %v1028, %v889
      %v1038 = vsel %vm1034, %v1029, %v891
      %v1039 = vsel %vm1034, %v1030, %v893
      %v1040 = vsel %vm1034, %v1031, %v895
      %v1041 = vsel %vm1034, %v1032, %v897
      %v1042 = vsel %vm1034, %v1033, %v899
      %v1043 = vld [vmem:[%s3] sm:$0xff]
      %v1044 = vld [vmem:[%s3 + $0x8] sm:$0xff]
      %v1045 = vld [vmem:[%s3 + $0x10] sm:$0xff]
      %v1046 = vld [vmem:[%s3 + $0x18] sm:$0xff]
      %v1047 = vld [vmem:[%s3 + $0x20] sm:$0xff]
      %v1048 = vld [vmem:[%s3 + $0x28] sm:$0xff]
      %v1049 = vld [vmem:[%s3 + $0x30] sm:$0xff]
      %v1050 = vld [vmem:[%s3 + $0x38] sm:$0xff]
      %vm1051 = vcmask 523264
      %v1053 = vsel %vm1051, %v1035, 0
      %v1056 = vsel %vm1051, %v1036, 0
      %v1059 = vsel %vm1051, %v1037, 0
      %v1062 = vsel %vm1051, %v1038, 0
      %v1065 = vsel %vm1051, %v1039, 0
      %v1068 = vsel %vm1051, %v1040, 0
      %v1071 = vsel %vm1051, %v1041, 0
      %v1074 = vsel %vm1051, %v1042, 0
      %1076 = vmatpush.msra.mxu0 0.0
      %1077 = vmatpush.msra.mxu0 0.0
      %1078 = vmatpush.msra.mxu0 0.0
      %1079 = vmatpush.msra.mxu0 0.0
      %1080 = vmatpush.msra.mxu0 0.0
      %1081 = vmatpush.msra.mxu0 0.0
      %1082 = vmatpush.msra.mxu0 0.0
      %1083 = vmatpush.msra.mxu0 0.0
      %1084 = vmatpush.msra.mxu0 %v1050
      %1085 = vmatpush.msra.mxu0 %v1049
      %1086 = vmatpush.msra.mxu0 %v1048
      %1087 = vmatpush.msra.mxu0 %v1047
      %1088 = vmatpush.msra.mxu0 %v1046
      %1089 = vmatpush.msra.mxu0 %v1045
      %1090 = vmatpush.msra.mxu0 %v1044
      %1091 = vmatpush.msra.mxu0 %v1043
      %1092 = vmatmul.f32.gmra.mxu0 %v1053
      %v1093 = vpop.f32.mrf.mxu0
      %v1094 = vadd.f32 0.0, %v1093
      %1095 = vmatmul.f32.gmra.mxu0 %v1056
      %v1096 = vpop.f32.mrf.mxu0
      %v1097 = vadd.f32 0.0, %v1096
      %1098 = vmatmul.f32.gmra.mxu0 %v1059
      %v1099 = vpop.f32.mrf.mxu0
      %v1100 = vadd.f32 0.0, %v1099
      %1101 = vmatmul.f32.gmra.mxu0 %v1062
      %v1102 = vpop.f32.mrf.mxu0
      %v1103 = vadd.f32 0.0, %v1102
      %1104 = vmatmul.f32.gmra.mxu0 %v1065
      %v1105 = vpop.f32.mrf.mxu0
      %v1106 = vadd.f32 0.0, %v1105
      %1107 = vmatmul.f32.gmra.mxu0 %v1068
      %v1108 = vpop.f32.mrf.mxu0
      %v1109 = vadd.f32 0.0, %v1108
      %1110 = vmatmul.f32.gmra.mxu0 %v1071
      %v1111 = vpop.f32.mrf.mxu0
      %v1112 = vadd.f32 0.0, %v1111
      %1113 = vmatmul.f32.gmra.mxu0 %v1074
      %v1114 = vpop.f32.mrf.mxu0
      %v1115 = vadd.f32 0.0, %v1114
      %1116 = vdwg.mxu0
      %1117 = vst.msk [vmem:[%s353] sm:$0xff] %vm917, %v1094
      %1118 = vst.msk [vmem:[%s353 + $0x8] sm:$0xff] %vm917, %v1097
      %1119 = vst.msk [vmem:[%s353 + $0x10] sm:$0xff] %vm917, %v1100
      %1120 = vst.msk [vmem:[%s353 + $0x18] sm:$0xff] %vm917, %v1103
      %1121 = vst.msk [vmem:[%s353 + $0x20] sm:$0xff] %vm917, %v1106
      %1122 = vst.msk [vmem:[%s353 + $0x28] sm:$0xff] %vm917, %v1109
      %1123 = vst.msk [vmem:[%s353 + $0x30] sm:$0xff] %vm917, %v1112
      %1124 = vst.msk [vmem:[%s353 + $0x38] sm:$0xff] %vm917, %v1115
      %s1125 = smul.u32 8, %s20
      %p1126 = scmp.lt.s32.totalorder %s19, 1
      %s1127 = scalar_select %p1126, %s19, 1
      %p1128 = scmp.lt.s32.totalorder %s1125, 7
      %s1129 = scalar_select %p1128, %s1125, 7
      %s1130 = smul.addr %s1127, 8
      %s1131 = sadd.s32 %s1129, %s1130
      %s1132 = smul.addr %s1131, 8
      %s1133 = scalar_lea.vmem %s4, %s1132
      // Predicated region
      $region37: #{downsample_forward.1} parent=35 // pred_check
        %p1134 = pneg %p168
      $region38: #{downsample_forward.1} parent=35 // pred_check_branch
        %1136 = sbr.rel (%p1134) target = $region40
      $region39: #{downsample_forward.1} parent=35 // pred_region
        %s1137 = smul.u32 8, %s20
      $region40: #{downsample_forward.1} parent=35 // pred_fallthru
        _
    $region36: #{downsample_forward.1} parent=5 // pred_fallthru
      _
    %p1138 = scmp.le.s32.totalorder 2, %s10
    // Predicated region
    $region41: #{downsample_forward.1} parent=5 // pred_check
      %p1139 = pneg %p1138
    $region42: #{downsample_forward.1} parent=5 // pred_check_branch
      %1141 = sbr.rel (%p1139) target = $region44
    $region43: #{downsample_forward.1} parent=5 // pred_region
      %s1142 = ssub.s32 %s10, 2
      // Predicated region
      $region45: #{downsample_forward.1} parent=43 // pred_check
        %p1143 = pneg %p174
      $region46: #{downsample_forward.1} parent=43 // pred_check_branch
        %1145 = sbr.rel (%p1143) target = $region48
      $region47: #{downsample_forward.1} parent=43 // pred_region
        %s1146 = smul.u32 8, %s22
        %p1147 = scmp.lt.s32.totalorder %s21, 1
        %s1148 = scalar_select %p1147, %s21, 1
        %p1149 = scmp.lt.s32.totalorder %s1146, 7
        %s1150 = scalar_select %p1149, %s1146, 7
        %s1151 = smul.addr %s1148, 8
        %s1152 = sadd.s32 %s1150, %s1151
        %s1153 = smul.addr %s1152, 8
        %s1154 = scalar_lea.vmem %s4, %s1153
      $region48: #{downsample_forward.1} parent=43 // pred_fallthru
        _
    $region44: #{downsample_forward.1} parent=5 // pred_fallthru
      _
  $region6: #{downsample_forward.1} parent=0 // loop_footer
    %s14 = sadd.s32 1, %s10
  $region7: #{downsample_forward.1} parent=0 // loop_footer_branch
    %9 = sbr.rel target = $region3
  $region8: #{downsample_forward.1} parent=0 // loop_exit
    _

</llo_original>
